<compile_context>
chip_gen: v7x
topology: tpu7x:2x2x1
jax: 0.10.0
libtpu: 0.0.40
codegen_flags: <defaults>
</compile_context>

<pallas_src>
import jax
import jax.numpy as jnp
from jax.experimental import pallas as pl
from jax.experimental.pallas import tpu as pltpu

HIDDEN = 64
LN_EPS = 1e-5


def _round_up(x, m):
    return ((x + m - 1) // m) * m


def _layernorm_fused(h, gamma, beta):
    # One pass over the lane axis: sum and sum-of-squares -> mu / var.
    s = jnp.sum(h, axis=-1, keepdims=True)
    s2 = jnp.sum(h * h, axis=-1, keepdims=True)
    mu = s * (1.0 / HIDDEN)
    var = s2 * (1.0 / HIDDEN) - mu * mu
    return (h - mu) * jax.lax.rsqrt(var + LN_EPS) * gamma + beta


def value_net_kernel(x_ref, w1_ref, w2_ref, w3_ref, vec_ref, b3_ref, o_ref):
    x = x_ref[...]                                  # (TB, state_dim) f32

    b1, g1, be1 = vec_ref[0:1, :], vec_ref[1:2, :], vec_ref[2:3, :]
    b2, g2, be2 = vec_ref[3:4, :], vec_ref[4:5, :], vec_ref[5:6, :]

    # Layer 1: Linear -> Tanh -> LayerNorm
    h = jnp.dot(x, w1_ref[...], preferred_element_type=jnp.float32) + b1
    h = jnp.tanh(h)
    h = _layernorm_fused(h, g1, be1)

    # Layer 2: Linear -> Tanh -> LayerNorm
    h = jnp.dot(h, w2_ref[...], preferred_element_type=jnp.float32) + b2
    h = jnp.tanh(h)
    h = _layernorm_fused(h, g2, be2)

    # Output head: (1, 64) . (TB, 64)^T -> (1, TB); lane-dense result row.
    v = jax.lax.dot_general(
        w3_ref[...], h, (((1,), (1,)), ((), ())),
        preferred_element_type=jnp.float32)
    o_ref[0] = (v + b3_ref[0]).astype(o_ref.dtype)  # (1, TB)


def value_network_forward(state, params, *, max_block_rows=1024):
    """state: [B, state_dim] float32 -> [B, 1] float32."""
    B, state_dim = state.shape

    # Batch tile: multiple of 128 (lane-dense output rows), capped so a
    # double-buffered (TB, state_dim) stream stays tiny even on v7x's 64 MiB
    # VMEM.  Small batches collapse to a single full-extent tile.
    TB = min(_round_up(max_block_rows, 128), _round_up(max(B, 1), 128))
    B_pad = _round_up(B, TB)
    G = B_pad // TB
    if B_pad != B:
        state = jnp.pad(state, ((0, B_pad - B), (0, 0)))

    # Pack the tiny per-layer vectors into a single resident (6, 64) operand.
    vec = jnp.concatenate(
        [params["b1"], params["g1"], params["be1"],
         params["b2"], params["g2"], params["be2"]], axis=0)
    w3_row = params["w3"].T                 # (1, 64)
    b3 = params["b3"].reshape((1,))         # scalar, lives in SMEM

    flops = 2 * B_pad * (state_dim * HIDDEN + HIDDEN * HIDDEN + HIDDEN)
    transcendentals = 2 * B_pad * HIDDEN    # tanh
    bytes_accessed = (B_pad * state_dim * 4 + B_pad * 4
                      + (state_dim * HIDDEN + HIDDEN * HIDDEN + 7 * HIDDEN + 1) * 4)

    out3 = pl.pallas_call(
        value_net_kernel,
        out_shape=jax.ShapeDtypeStruct((G, 1, TB), jnp.float32),
        grid=(G,),
        in_specs=[
            # Streamed batch tile.
            pl.BlockSpec((TB, state_dim), lambda i: (i, 0)),
            # Resident weights / params (constant block index -> fetched once).
            pl.BlockSpec((state_dim, HIDDEN), lambda i: (0, 0)),
            pl.BlockSpec((HIDDEN, HIDDEN), lambda i: (0, 0)),
            pl.BlockSpec((1, HIDDEN), lambda i: (0, 0)),
            pl.BlockSpec((6, HIDDEN), lambda i: (0, 0)),
            # Scalar output bias in SMEM.
            pl.BlockSpec(memory_space=pltpu.MemorySpace.SMEM),
        ],
        out_specs=pl.BlockSpec((1, 1, TB), lambda i: (i, 0, 0)),
        compiler_params=pltpu.CompilerParams(
            dimension_semantics=("parallel",),
            vmem_limit_bytes=32 * 1024 * 1024),
        cost_estimate=pl.CostEstimate(
            flops=flops, transcendentals=transcendentals,
            bytes_accessed=bytes_accessed),
    )(state, params["w1"], params["w2"], w3_row, vec, b3)

    return out3.reshape(B_pad, 1)[:B]


def xavier_uniform(key, fan_in, fan_out, gain=1.0):
    # Matches torch.nn.init.xavier_uniform_ (gain * sqrt(6/(fan_in+fan_out))).
    limit = gain * (6.0 / (fan_in + fan_out)) ** 0.5
    # Returned transposed [in, out] so the kernel computes x @ W.
    return jax.random.uniform(key, (fan_in, fan_out), jnp.float32, -limit, limit)


def init_params(key, state_dim):
    k1, k2, k3 = jax.random.split(key, 3)
    return {
        "w1": xavier_uniform(k1, state_dim, HIDDEN),
        "b1": jnp.zeros((1, HIDDEN), jnp.float32),
        "g1": jnp.ones((1, HIDDEN), jnp.float32),
        "be1": jnp.zeros((1, HIDDEN), jnp.float32),
        "w2": xavier_uniform(k2, HIDDEN, HIDDEN),
        "b2": jnp.zeros((1, HIDDEN), jnp.float32),
        "g2": jnp.ones((1, HIDDEN), jnp.float32),
        "be2": jnp.zeros((1, HIDDEN), jnp.float32),
        "w3": xavier_uniform(k3, HIDDEN, 1),
        "b3": jnp.zeros((1, 1), jnp.float32),
    }


def value_network_ref(state, p):
    """Pure-JAX reference (same math as the PyTorch module)."""
    def ln(h, g, b):
        mu = jnp.mean(h, axis=-1, keepdims=True)
        var = jnp.mean((h - mu) ** 2, axis=-1, keepdims=True)
        return (h - mu) / jnp.sqrt(var + LN_EPS) * g + b
    h = jnp.tanh(state @ p["w1"] + p["b1"])
    h = ln(h, p["g1"], p["be1"])
    h = jnp.tanh(h @ p["w2"] + p["b2"])
    h = ln(h, p["g2"], p["be2"])
    return h @ p["w3"] + p["b3"]


if __name__ == "__main__":
    key = jax.random.PRNGKey(0)
    k_param, k_small, k_large = jax.random.split(key, 3)

    state_dim = 16
    params = init_params(k_param, state_dim)

    # Tolerance allows for TPU default matmul precision in the XLA reference
    # and the fused (sum, sum-of-squares) LayerNorm statistics in the kernel.
    TOL = 2e-3

    # Small shape (single tile).
    state = jax.random.normal(k_small, (8, state_dim), jnp.float32)
    out = jax.block_until_ready(value_network_forward(state, params))
    ref = value_network_ref(state, params)
    assert out.shape == (8, 1), out.shape
    assert jnp.allclose(out, ref, atol=TOL, rtol=TOL), float(jnp.abs(out - ref).max())

    # Multi-tile path: exercises padding, pipelined batch tiles and the
    # parallel grid axis (3 tiles of 1024 rows).
    state_l = jax.random.normal(k_large, (2304, state_dim), jnp.float32)
    out_l = jax.block_until_ready(value_network_forward(state_l, params))
    ref_l = value_network_ref(state_l, params)
    assert out_l.shape == (2304, 1), out_l.shape
    assert jnp.allclose(out_l, ref_l, atol=TOL, rtol=TOL), float(jnp.abs(out_l - ref_l).max())

    print("KERNEL_OK")
</pallas_src>

<mosaic_0001>
module attributes {stable_mosaic.version = 11 : i64} {
  func.func @value_net_kernel(%arg0: i32, %arg1: memref<128x16xf32, #tpu.memory_space<vmem>>, %arg2: memref<16x64xf32, #tpu.memory_space<vmem>>, %arg3: memref<64x64xf32, #tpu.memory_space<vmem>>, %arg4: memref<1x64xf32, #tpu.memory_space<vmem>>, %arg5: memref<6x64xf32, #tpu.memory_space<vmem>>, %arg6: memref<1xf32, #tpu.memory_space<smem>>, %arg7: memref<1x1x128xf32, #tpu.memory_space<vmem>>) attributes {dimension_semantics = [#tpu.dimension_semantics<parallel>], iteration_bounds = array<i64: 1>, scalar_prefetch = 0 : i64, scratch_operands = 0 : i64, tpu.core_type = #tpu.core_type<tc>, window_params = [{transform_indices = @transform_0, window_bounds = array<i64: 128, 16>}, {pipeline_mode = #tpu.pipeline_mode<synchronous>, transform_indices = @transform_1, window_bounds = array<i64: 16, 64>}, {pipeline_mode = #tpu.pipeline_mode<synchronous>, transform_indices = @transform_2, window_bounds = array<i64: 64, 64>}, {pipeline_mode = #tpu.pipeline_mode<synchronous>, transform_indices = @transform_3, window_bounds = array<i64: 1, 64>}, {pipeline_mode = #tpu.pipeline_mode<synchronous>, transform_indices = @transform_4, window_bounds = array<i64: 6, 64>}, {transform_indices = @transform_5, window_bounds = array<i64: 1>}, {transform_indices = @transform_6, window_bounds = array<i64: 1, 1, 128>}]} {
    %c0 = arith.constant 0 : index
    %c0_0 = arith.constant 0 : index
    %0 = vector.load %arg1[%c0, %c0_0] : memref<128x16xf32, #tpu.memory_space<vmem>>, vector<128x16xf32>
    %c0_1 = arith.constant 0 : index
    %c0_2 = arith.constant 0 : index
    %1 = vector.load %arg5[%c0_1, %c0_2] : memref<6x64xf32, #tpu.memory_space<vmem>>, vector<1x64xf32>
    %c1 = arith.constant 1 : index
    %c0_3 = arith.constant 0 : index
    %2 = vector.load %arg5[%c1, %c0_3] : memref<6x64xf32, #tpu.memory_space<vmem>>, vector<1x64xf32>
    %c2 = arith.constant 2 : index
    %c0_4 = arith.constant 0 : index
    %3 = vector.load %arg5[%c2, %c0_4] : memref<6x64xf32, #tpu.memory_space<vmem>>, vector<1x64xf32>
    %c3 = arith.constant 3 : index
    %c0_5 = arith.constant 0 : index
    %4 = vector.load %arg5[%c3, %c0_5] : memref<6x64xf32, #tpu.memory_space<vmem>>, vector<1x64xf32>
    %c4 = arith.constant 4 : index
    %c0_6 = arith.constant 0 : index
    %5 = vector.load %arg5[%c4, %c0_6] : memref<6x64xf32, #tpu.memory_space<vmem>>, vector<1x64xf32>
    %c5 = arith.constant 5 : index
    %c0_7 = arith.constant 0 : index
    %6 = vector.load %arg5[%c5, %c0_7] : memref<6x64xf32, #tpu.memory_space<vmem>>, vector<1x64xf32>
    %c0_8 = arith.constant 0 : index
    %c0_9 = arith.constant 0 : index
    %7 = vector.load %arg2[%c0_8, %c0_9] : memref<16x64xf32, #tpu.memory_space<vmem>>, vector<16x64xf32>
    %cst = arith.constant dense<0.000000e+00> : vector<128x64xf32>
    %8 = tpu.matmul %0, %7, %cst {dimension_numbers = #tpu.dot_dimension_numbers<[1], [0], [0], [1], [0, 0, 1, 1], [], []>} : vector<128x16xf32>, vector<16x64xf32>, vector<128x64xf32> -> vector<128x64xf32>
    %9 = vector.broadcast %1 : vector<1x64xf32> to vector<128x64xf32>
    %10 = arith.addf %8, %9 : vector<128x64xf32>
    %11 = math.tanh %10 : vector<128x64xf32>
    %cst_10 = arith.constant dense<0.000000e+00> : vector<128xf32>
    %12 = vector.multi_reduction <add>, %11, %cst_10 [1] : vector<128x64xf32> to vector<128xf32>
    %13 = vector.shape_cast %12 : vector<128xf32> to vector<128x1xf32>
    %14 = arith.mulf %11, %11 : vector<128x64xf32>
    %cst_11 = arith.constant dense<0.000000e+00> : vector<128xf32>
    %15 = vector.multi_reduction <add>, %14, %cst_11 [1] : vector<128x64xf32> to vector<128xf32>
    %16 = vector.shape_cast %15 : vector<128xf32> to vector<128x1xf32>
    %cst_12 = arith.constant 1.562500e-02 : f32
    %17 = vector.broadcast %cst_12 : f32 to vector<128x1xf32>
    %18 = arith.mulf %13, %17 : vector<128x1xf32>
    %cst_13 = arith.constant 1.562500e-02 : f32
    %19 = vector.broadcast %cst_13 : f32 to vector<128x1xf32>
    %20 = arith.mulf %16, %19 : vector<128x1xf32>
    %21 = arith.mulf %18, %18 : vector<128x1xf32>
    %22 = arith.subf %20, %21 : vector<128x1xf32>
    %23 = vector.broadcast %18 : vector<128x1xf32> to vector<128x64xf32>
    %24 = arith.subf %11, %23 : vector<128x64xf32>
    %cst_14 = arith.constant 9.99999974E-6 : f32
    %25 = vector.broadcast %cst_14 : f32 to vector<128x1xf32>
    %26 = arith.addf %22, %25 : vector<128x1xf32>
    %27 = math.rsqrt %26 : vector<128x1xf32>
    %28 = vector.broadcast %27 : vector<128x1xf32> to vector<128x64xf32>
    %29 = arith.mulf %24, %28 : vector<128x64xf32>
    %30 = vector.broadcast %2 : vector<1x64xf32> to vector<128x64xf32>
    %31 = arith.mulf %29, %30 : vector<128x64xf32>
    %32 = vector.broadcast %3 : vector<1x64xf32> to vector<128x64xf32>
    %33 = arith.addf %31, %32 : vector<128x64xf32>
    %c0_15 = arith.constant 0 : index
    %c0_16 = arith.constant 0 : index
    %34 = vector.load %arg3[%c0_15, %c0_16] : memref<64x64xf32, #tpu.memory_space<vmem>>, vector<64x64xf32>
    %cst_17 = arith.constant dense<0.000000e+00> : vector<128x64xf32>
    %35 = tpu.matmul %33, %34, %cst_17 {dimension_numbers = #tpu.dot_dimension_numbers<[1], [0], [0], [1], [0, 0, 1, 1], [], []>} : vector<128x64xf32>, vector<64x64xf32>, vector<128x64xf32> -> vector<128x64xf32>
    %36 = vector.broadcast %4 : vector<1x64xf32> to vector<128x64xf32>
    %37 = arith.addf %35, %36 : vector<128x64xf32>
    %38 = math.tanh %37 : vector<128x64xf32>
    %cst_18 = arith.constant dense<0.000000e+00> : vector<128xf32>
    %39 = vector.multi_reduction <add>, %38, %cst_18 [1] : vector<128x64xf32> to vector<128xf32>
    %40 = vector.shape_cast %39 : vector<128xf32> to vector<128x1xf32>
    %41 = arith.mulf %38, %38 : vector<128x64xf32>
    %cst_19 = arith.constant dense<0.000000e+00> : vector<128xf32>
    %42 = vector.multi_reduction <add>, %41, %cst_19 [1] : vector<128x64xf32> to vector<128xf32>
    %43 = vector.shape_cast %42 : vector<128xf32> to vector<128x1xf32>
    %cst_20 = arith.constant 1.562500e-02 : f32
    %44 = vector.broadcast %cst_20 : f32 to vector<128x1xf32>
    %45 = arith.mulf %40, %44 : vector<128x1xf32>
    %cst_21 = arith.constant 1.562500e-02 : f32
    %46 = vector.broadcast %cst_21 : f32 to vector<128x1xf32>
    %47 = arith.mulf %43, %46 : vector<128x1xf32>
    %48 = arith.mulf %45, %45 : vector<128x1xf32>
    %49 = arith.subf %47, %48 : vector<128x1xf32>
    %50 = vector.broadcast %45 : vector<128x1xf32> to vector<128x64xf32>
    %51 = arith.subf %38, %50 : vector<128x64xf32>
    %cst_22 = arith.constant 9.99999974E-6 : f32
    %52 = vector.broadcast %cst_22 : f32 to vector<128x1xf32>
    %53 = arith.addf %49, %52 : vector<128x1xf32>
    %54 = math.rsqrt %53 : vector<128x1xf32>
    %55 = vector.broadcast %54 : vector<128x1xf32> to vector<128x64xf32>
    %56 = arith.mulf %51, %55 : vector<128x64xf32>
    %57 = vector.broadcast %5 : vector<1x64xf32> to vector<128x64xf32>
    %58 = arith.mulf %56, %57 : vector<128x64xf32>
    %59 = vector.broadcast %6 : vector<1x64xf32> to vector<128x64xf32>
    %60 = arith.addf %58, %59 : vector<128x64xf32>
    %c0_23 = arith.constant 0 : index
    %c0_24 = arith.constant 0 : index
    %61 = vector.load %arg4[%c0_23, %c0_24] : memref<1x64xf32, #tpu.memory_space<vmem>>, vector<1x64xf32>
    %cst_25 = arith.constant dense<0.000000e+00> : vector<1x128xf32>
    %62 = tpu.matmul %61, %60, %cst_25 {dimension_numbers = #tpu.dot_dimension_numbers<[1], [1], [0], [0], [0, 0, 1, 0], [], []>} : vector<1x64xf32>, vector<128x64xf32>, vector<1x128xf32> -> vector<1x128xf32>
    %c0_26 = arith.constant 0 : index
    %63 = memref.load %arg6[%c0_26] : memref<1xf32, #tpu.memory_space<smem>>
    %64 = vector.broadcast %63 : f32 to vector<1x128xf32>
    %65 = arith.addf %62, %64 : vector<1x128xf32>
    %c0_27 = arith.constant 0 : index
    %c0_28 = arith.constant 0 : index
    %c0_29 = arith.constant 0 : index
    %66 = vector.load %arg7[%c0_27, %c0_28, %c0_29] : memref<1x1x128xf32, #tpu.memory_space<vmem>>, vector<1x1x128xf32>
    %67 = vector.shape_cast %66 : vector<1x1x128xf32> to vector<1x128xf32>
    %68 = vector.shape_cast %65 : vector<1x128xf32> to vector<1x1x128xf32>
    tpu.vector_store %arg7[%c0_27, %c0_28, %c0_29], %68 {strides = array<i32>} : memref<1x1x128xf32, #tpu.memory_space<vmem>>, vector<1x1x128xf32>,
    return
  }
  func.func @transform_0(%arg0: i32) -> (i32, i32) {
    %c0_i32 = arith.constant 0 : i32
    %c0_i32_0 = arith.constant 0 : i32
    return %arg0, %c0_i32 : i32, i32
  }
  func.func @transform_1(%arg0: i32) -> (i32, i32) {
    %c0_i32 = arith.constant 0 : i32
    %c0_i32_0 = arith.constant 0 : i32
    %c0_i32_1 = arith.constant 0 : i32
    return %c0_i32, %c0_i32_0 : i32, i32
  }
  func.func @transform_2(%arg0: i32) -> (i32, i32) {
    %c0_i32 = arith.constant 0 : i32
    %c0_i32_0 = arith.constant 0 : i32
    %c0_i32_1 = arith.constant 0 : i32
    return %c0_i32, %c0_i32_0 : i32, i32
  }
  func.func @transform_3(%arg0: i32) -> (i32, i32) {
    %c0_i32 = arith.constant 0 : i32
    %c0_i32_0 = arith.constant 0 : i32
    %c0_i32_1 = arith.constant 0 : i32
    return %c0_i32, %c0_i32_0 : i32, i32
  }
  func.func @transform_4(%arg0: i32) -> (i32, i32) {
    %c0_i32 = arith.constant 0 : i32
    %c0_i32_0 = arith.constant 0 : i32
    %c0_i32_1 = arith.constant 0 : i32
    return %c0_i32, %c0_i32_0 : i32, i32
  }
  func.func @transform_5(%arg0: i32) -> i32 {
    %c0_i32 = arith.constant 0 : i32
    %c0_i32_0 = arith.constant 0 : i32
    return %c0_i32 : i32
  }
  func.func @transform_6(%arg0: i32) -> (i32, i32, i32) {
    %c0_i32 = arith.constant 0 : i32
    %c0_i32_0 = arith.constant 0 : i32
    %c0_i32_1 = arith.constant 0 : i32
    return %arg0, %c0_i32, %c0_i32_0 : i32, i32, i32
  }
}

</mosaic_0001>

<llo_original>
// kernel: tpu_custom_call.1
$region0: #{tpu_custom_call.1}
  #allocation0 [shape = 'u32[]', space=smem, size = 0x4, offset = 0x4, fixed_abs, tag = 'smem constant byte address 0x4 - core index']
  #allocation1 [shape = 'u32[144,128]{1,0:T(1,128)}', space=vmem, size = 0x12000, scoped, tag = 'internal scratch']
  #allocation2 [shape = 'f32[1]{0:T(128)S(6)}', space=smem, size = 0x200, scoped, tag = 'scoped memory for tpu_custom_call.1']
  %s0 = inlined_call_operand.vmem [shape: f32[128,16], index: 0, kind: input, shape index: {}]
  %s1 = inlined_call_operand.vmem [shape: f32[16,64], index: 1, kind: input, shape index: {}]
  %s2 = inlined_call_operand.vmem [shape: f32[64,64], index: 2, kind: input, shape index: {}]
  %s3 = inlined_call_operand.vmem [shape: f32[1,64], index: 3, kind: input, shape index: {}]
  %s4 = inlined_call_operand.vmem [shape: f32[6,64], index: 4, kind: input, shape index: {}]
  %s5 = inlined_call_operand.<no memory space> [shape: f32[1], index: 5, kind: input, shape index: {}]
  %s6 = inlined_call_operand.hbm [shape: f32[1,1,128], index: 6, kind: output, shape index: {}]
  %s7 = sld [smem:[#allocation0]]
  $region34: #{tpu_custom_call.1} parent=0
    _
  %s9 = ssub.s32 1, %s7
  %s10 = scalar_select 0, %s9, %s7
  %11 = sst [smem:[#allocation2]] %s5
  $region1: #{tpu_custom_call.1} parent=0
    #allocation3 [shape = 'u8[512]{0}', space=vmem, size = 0x400, scoped, tag = 'output window, operand 0, single buffered']
    #allocation4 [shape = 's32[1]{0}', space=sflag, size = 0x4, scoped, tag = 'scoped memory for tpu_custom_call.1']
    %12 = vsyncpa [#allocation4], 0
    // Predicated region
    $region2: #{tpu_custom_call.1} parent=1 // pred_check
      _
    $region3: #{tpu_custom_call.1} parent=1 // pred_check_branch
      %14 = sbr.rel (0) target = $region5
    $region4: #{tpu_custom_call.1} parent=1 // pred_region
      _
    $region5: #{tpu_custom_call.1} parent=1 // pred_fallthru
      _
    // Predicated region
    $region6: #{tpu_custom_call.1} parent=1 // pred_check
      _
    $region7: #{tpu_custom_call.1} parent=1 // pred_check_branch
      %16 = sbr.rel (0) target = $region9
    $region8: #{tpu_custom_call.1} parent=1 // pred_region
      _
    $region9: #{tpu_custom_call.1} parent=1 // pred_fallthru
      _
    // Predicated region
    $region10: #{tpu_custom_call.1} parent=1 // pred_check
      _
    $region11: #{tpu_custom_call.1} parent=1 // pred_check_branch
      %18 = sbr.rel (0) target = $region13
    $region12: #{tpu_custom_call.1} parent=1 // pred_region
      _
    $region13: #{tpu_custom_call.1} parent=1 // pred_fallthru
      _
    // Predicated region
    $region14: #{tpu_custom_call.1} parent=1 // pred_check
      _
    $region15: #{tpu_custom_call.1} parent=1 // pred_check_branch
      %20 = sbr.rel (0) target = $region17
    $region16: #{tpu_custom_call.1} parent=1 // pred_region
      _
    $region17: #{tpu_custom_call.1} parent=1 // pred_fallthru
      _
    // Predicated region
    $region18: #{tpu_custom_call.1} parent=1 // pred_check
      _
    $region19: #{tpu_custom_call.1} parent=1 // pred_check_branch
      %22 = sbr.rel (0) target = $region21
    $region20: #{tpu_custom_call.1} parent=1 // pred_region
      _
    $region21: #{tpu_custom_call.1} parent=1 // pred_fallthru
      _
    // Predicated region
    $region22: #{tpu_custom_call.1} parent=1 // pred_check
      _
    $region23: #{tpu_custom_call.1} parent=1 // pred_check_branch
      %24 = sbr.rel (0) target = $region25
    $region24: #{tpu_custom_call.1} parent=1 // pred_region
      _
    $region25: #{tpu_custom_call.1} parent=1 // pred_fallthru
      _
    %v25 = vld [vmem:[%s0] sm:$0xff]
    %v26 = vld [vmem:[%s0 + $0x8] sm:$0xff]
    %v27 = vld [vmem:[%s0 + $0x10] sm:$0xff]
    %v28 = vld [vmem:[%s0 + $0x18] sm:$0xff]
    %v29 = vld [vmem:[%s0 + $0x20] sm:$0xff]
    %v30 = vld [vmem:[%s0 + $0x28] sm:$0xff]
    %v31 = vld [vmem:[%s0 + $0x30] sm:$0xff]
    %v32 = vld [vmem:[%s0 + $0x38] sm:$0xff]
    %v33 = vld [vmem:[%s0 + $0x40] sm:$0xff]
    %v34 = vld [vmem:[%s0 + $0x48] sm:$0xff]
    %v35 = vld [vmem:[%s0 + $0x50] sm:$0xff]
    %v36 = vld [vmem:[%s0 + $0x58] sm:$0xff]
    %v37 = vld [vmem:[%s0 + $0x60] sm:$0xff]
    %v38 = vld [vmem:[%s0 + $0x68] sm:$0xff]
    %v39 = vld [vmem:[%s0 + $0x70] sm:$0xff]
    %v40 = vld [vmem:[%s0 + $0x78] sm:$0xff]
    %v41 = vld [vmem:[%s4] sm:$0x1]
    %v42 = vld [vmem:[%s4 + $0x1] sm:$0x1]
    %v43 = vld [vmem:[%s4 + $0x2] sm:$0x1]
    %v44 = vld [vmem:[%s4 + $0x3] sm:$0x1]
    %v45 = vld [vmem:[%s4 + $0x4] sm:$0x1]
    %v46 = vld [vmem:[%s4 + $0x5] sm:$0x1]
    %v47 = vld [vmem:[%s1] sm:$0xff]
    %v48 = vld [vmem:[%s1 + $0x8] sm:$0xff]
    %v49 = vlaneseq
    %v50 = vshrl.u32 %v49, 7
    %v51 = vsub.s32 0, %v50
    %v52 = vrot.slane %v41, %v51
    %vm53 = vcmask 130048
    %v55 = vsel %vm53, %v25, 0
    %v58 = vsel %vm53, %v26, 0
    %v61 = vsel %vm53, %v27, 0
    %v64 = vsel %vm53, %v28, 0
    %v67 = vsel %vm53, %v29, 0
    %v70 = vsel %vm53, %v30, 0
    %v73 = vsel %vm53, %v31, 0
    %v76 = vsel %vm53, %v32, 0
    %v79 = vsel %vm53, %v33, 0
    %v82 = vsel %vm53, %v34, 0
    %v85 = vsel %vm53, %v35, 0
    %v88 = vsel %vm53, %v36, 0
    %v91 = vsel %vm53, %v37, 0
    %v94 = vsel %vm53, %v38, 0
    %v97 = vsel %vm53, %v39, 0
    %v100 = vsel %vm53, %v40, 0
    %102 = vmatprep.subr.mxu0 0.0
    %103 = vmatpush1.msra.mxu0 %v47
    %104 = vmatprep.subr.mxu0 0.0
    %105 = vmatpush1.msra.mxu0 %v48
    %106 = vmatprep.subr.mxu0 0.0
    %107 = vmatpush1.msra.mxu0 0.0
    %108 = vmatprep.subr.mxu0 0.0
    %109 = vmatpush1.msra.mxu0 0.0
    %110 = vmatprep.subr.mxu0 0.0
    %111 = vmatpush1.msra.mxu0 0.0
    %112 = vmatprep.subr.mxu0 0.0
    %113 = vmatpush1.msra.mxu0 0.0
    %114 = vmatprep.subr.mxu0 0.0
    %115 = vmatpush1.msra.mxu0 0.0
    %116 = vmatprep.subr.mxu0 0.0
    %117 = vmatpush1.msra.mxu0 0.0
    %118 = vmatprep.subr.mxu0 0.0
    %119 = vmatpush1.msra.mxu0 0.0
    %120 = vmatprep.subr.mxu0 0.0
    %121 = vmatpush1.msra.mxu0 0.0
    %122 = vmatprep.subr.mxu0 0.0
    %123 = vmatpush1.msra.mxu0 0.0
    %124 = vmatprep.subr.mxu0 0.0
    %125 = vmatpush1.msra.mxu0 0.0
    %126 = vmatprep.subr.mxu0 0.0
    %127 = vmatpush1.msra.mxu0 0.0
    %128 = vmatprep.subr.mxu0 0.0
    %129 = vmatpush1.msra.mxu0 0.0
    %130 = vmatprep.subr.mxu0 0.0
    %131 = vmatpush1.msra.mxu0 0.0
    %132 = vmatprep.subr.mxu0 0.0
    %133 = vmatpush1.msra.mxu0 0.0
    %134 = vmatprep.subr.mxu0 0.0
    %135 = vmatpush1.msra.mxu0 0.0
    %136 = vmatprep.subr.mxu0 0.0
    %137 = vmatpush1.msra.mxu0 0.0
    %138 = vmatprep.subr.mxu0 0.0
    %139 = vmatpush1.msra.mxu0 0.0
    %140 = vmatprep.subr.mxu0 0.0
    %141 = vmatpush1.msra.mxu0 0.0
    %142 = vmatprep.subr.mxu0 0.0
    %143 = vmatpush1.msra.mxu0 0.0
    %144 = vmatprep.subr.mxu0 0.0
    %145 = vmatpush1.msra.mxu0 0.0
    %146 = vmatprep.subr.mxu0 0.0
    %147 = vmatpush1.msra.mxu0 0.0
    %148 = vmatprep.subr.mxu0 0.0
    %149 = vmatpush1.msra.mxu0 0.0
    %150 = vmatprep.subr.mxu0 0.0
    %151 = vmatpush1.msra.mxu0 0.0
    %152 = vmatprep.subr.mxu0 0.0
    %153 = vmatpush1.msra.mxu0 0.0
    %154 = vmatprep.subr.mxu0 0.0
    %155 = vmatpush1.msra.mxu0 0.0
    %156 = vmatprep.subr.mxu0 0.0
    %157 = vmatpush1.msra.mxu0 0.0
    %158 = vmatprep.subr.mxu0 0.0
    %159 = vmatpush1.msra.mxu0 0.0
    %160 = vmatprep.subr.mxu0 0.0
    %161 = vmatpush1.msra.mxu0 0.0
    %162 = vmatprep.subr.mxu0 0.0
    %163 = vmatpush1.msra.mxu0 0.0
    %164 = vmatprep.subr.mxu0 0.0
    %165 = vmatpush1.msra.mxu0 0.0
    %166 = vmatprep.mubr.f32.mxu0 0.0
    %167 = vmatmul.mubr.f32.gmra.mrb[0].mxu0 %v55
    %v168 = vpop.f32.mrb[0].mxu0
    %v169 = vadd.f32 %v52, %v168
    %v170 = vpop.f32.mrb[0].mxu0
    %171 = vmatprep.mubr.f32.mxu0 0.0
    %172 = vmatmul.mubr.f32.gmra.mrb[0].mxu0 %v58
    %v173 = vpop.f32.mrb[0].mxu0
    %v174 = vadd.f32 %v52, %v173
    %v175 = vpop.f32.mrb[0].mxu0
    %176 = vmatprep.mubr.f32.mxu0 0.0
    %177 = vmatmul.mubr.f32.gmra.mrb[0].mxu0 %v61
    %v178 = vpop.f32.mrb[0].mxu0
    %v179 = vadd.f32 %v52, %v178
    %v180 = vpop.f32.mrb[0].mxu0
    %181 = vmatprep.mubr.f32.mxu0 0.0
    %182 = vmatmul.mubr.f32.gmra.mrb[0].mxu0 %v64
    %v183 = vpop.f32.mrb[0].mxu0
    %v184 = vadd.f32 %v52, %v183
    %v185 = vpop.f32.mrb[0].mxu0
    %186 = vmatprep.mubr.f32.mxu0 0.0
    %187 = vmatmul.mubr.f32.gmra.mrb[0].mxu0 %v67
    %v188 = vpop.f32.mrb[0].mxu0
    %v189 = vadd.f32 %v52, %v188
    %v190 = vpop.f32.mrb[0].mxu0
    %191 = vmatprep.mubr.f32.mxu0 0.0
    %192 = vmatmul.mubr.f32.gmra.mrb[0].mxu0 %v70
    %v193 = vpop.f32.mrb[0].mxu0
    %v194 = vadd.f32 %v52, %v193
    %v195 = vpop.f32.mrb[0].mxu0
    %196 = vmatprep.mubr.f32.mxu0 0.0
    %197 = vmatmul.mubr.f32.gmra.mrb[0].mxu0 %v73
    %v198 = vpop.f32.mrb[0].mxu0
    %v199 = vadd.f32 %v52, %v198
    %v200 = vpop.f32.mrb[0].mxu0
    %201 = vmatprep.mubr.f32.mxu0 0.0
    %202 = vmatmul.mubr.f32.gmra.mrb[0].mxu0 %v76
    %v203 = vpop.f32.mrb[0].mxu0
    %v204 = vadd.f32 %v52, %v203
    %v205 = vpop.f32.mrb[0].mxu0
    %206 = vmatprep.mubr.f32.mxu0 0.0
    %207 = vmatmul.mubr.f32.gmra.mrb[0].mxu0 %v79
    %v208 = vpop.f32.mrb[0].mxu0
    %v209 = vadd.f32 %v52, %v208
    %v210 = vpop.f32.mrb[0].mxu0
    %211 = vmatprep.mubr.f32.mxu0 0.0
    %212 = vmatmul.mubr.f32.gmra.mrb[0].mxu0 %v82
    %v213 = vpop.f32.mrb[0].mxu0
    %v214 = vadd.f32 %v52, %v213
    %v215 = vpop.f32.mrb[0].mxu0
    %216 = vmatprep.mubr.f32.mxu0 0.0
    %217 = vmatmul.mubr.f32.gmra.mrb[0].mxu0 %v85
    %v218 = vpop.f32.mrb[0].mxu0
    %v219 = vadd.f32 %v52, %v218
    %v220 = vpop.f32.mrb[0].mxu0
    %221 = vmatprep.mubr.f32.mxu0 0.0
    %222 = vmatmul.mubr.f32.gmra.mrb[0].mxu0 %v88
    %v223 = vpop.f32.mrb[0].mxu0
    %v224 = vadd.f32 %v52, %v223
    %v225 = vpop.f32.mrb[0].mxu0
    %226 = vmatprep.mubr.f32.mxu0 0.0
    %227 = vmatmul.mubr.f32.gmra.mrb[0].mxu0 %v91
    %v228 = vpop.f32.mrb[0].mxu0
    %v229 = vadd.f32 %v52, %v228
    %v230 = vpop.f32.mrb[0].mxu0
    %231 = vmatprep.mubr.f32.mxu0 0.0
    %232 = vmatmul.mubr.f32.gmra.mrb[0].mxu0 %v94
    %v233 = vpop.f32.mrb[0].mxu0
    %v234 = vadd.f32 %v52, %v233
    %v235 = vpop.f32.mrb[0].mxu0
    %236 = vmatprep.mubr.f32.mxu0 0.0
    %237 = vmatmul.mubr.f32.gmra.mrb[0].mxu0 %v97
    %v238 = vpop.f32.mrb[0].mxu0
    %v239 = vadd.f32 %v52, %v238
    %v240 = vpop.f32.mrb[0].mxu0
    %241 = vmatprep.mubr.f32.mxu0 0.0
    %242 = vmatmul.mubr.f32.gmra.mrb[0].mxu0 %v100
    %v243 = vpop.f32.mrb[0].mxu0
    %v244 = vadd.f32 %v52, %v243
    %v245 = vpop.f32.mrb[0].mxu0
    %246 = vdwg.mxu0
    %v247 = vtanh.pop %v169
    %v248 = vtanh.pop %v174
    %v249 = vtanh.pop %v179
    %v250 = vtanh.pop %v184
    %v251 = vtanh.pop %v189
    %v252 = vtanh.pop %v194
    %v253 = vtanh.pop %v199
    %v254 = vtanh.pop %v204
    %v255 = vtanh.pop %v209
    %v256 = vtanh.pop %v214
    %v257 = vtanh.pop %v219
    %v258 = vtanh.pop %v224
    %v259 = vtanh.pop %v229
    %v260 = vtanh.pop %v234
    %v261 = vtanh.pop %v239
    %v262 = vtanh.pop %v244
    %vm263 = vcmask 523264
    %v264 = vsel %vm263, %v247, 0.0
    %265 = vadd.xlane.f32.xlu0 %v264
    %v266 = vpop.xlane.xlu0 %265
    %v267 = vsel %vm263, %v248, 0.0
    %268 = vadd.xlane.f32.xlu0 %v267
    %v269 = vpop.xlane.xlu0 %268
    %v270 = vsel %vm263, %v249, 0.0
    %271 = vadd.xlane.f32.xlu0 %v270
    %v272 = vpop.xlane.xlu0 %271
    %v273 = vsel %vm263, %v250, 0.0
    %274 = vadd.xlane.f32.xlu0 %v273
    %v275 = vpop.xlane.xlu0 %274
    %v276 = vsel %vm263, %v251, 0.0
    %277 = vadd.xlane.f32.xlu0 %v276
    %v278 = vpop.xlane.xlu0 %277
    %v279 = vsel %vm263, %v252, 0.0
    %280 = vadd.xlane.f32.xlu0 %v279
    %v281 = vpop.xlane.xlu0 %280
    %v282 = vsel %vm263, %v253, 0.0
    %283 = vadd.xlane.f32.xlu0 %v282
    %v284 = vpop.xlane.xlu0 %283
    %v285 = vsel %vm263, %v254, 0.0
    %286 = vadd.xlane.f32.xlu0 %v285
    %v287 = vpop.xlane.xlu0 %286
    %v288 = vsel %vm263, %v255, 0.0
    %289 = vadd.xlane.f32.xlu0 %v288
    %v290 = vpop.xlane.xlu0 %289
    %v291 = vsel %vm263, %v256, 0.0
    %292 = vadd.xlane.f32.xlu0 %v291
    %v293 = vpop.xlane.xlu0 %292
    %v294 = vsel %vm263, %v257, 0.0
    %295 = vadd.xlane.f32.xlu0 %v294
    %v296 = vpop.xlane.xlu0 %295
    %v297 = vsel %vm263, %v258, 0.0
    %298 = vadd.xlane.f32.xlu0 %v297
    %v299 = vpop.xlane.xlu0 %298
    %v300 = vsel %vm263, %v259, 0.0
    %301 = vadd.xlane.f32.xlu0 %v300
    %v302 = vpop.xlane.xlu0 %301
    %v303 = vsel %vm263, %v260, 0.0
    %304 = vadd.xlane.f32.xlu0 %v303
    %v305 = vpop.xlane.xlu0 %304
    %v306 = vsel %vm263, %v261, 0.0
    %307 = vadd.xlane.f32.xlu0 %v306
    %v308 = vpop.xlane.xlu0 %307
    %v309 = vsel %vm263, %v262, 0.0
    %310 = vadd.xlane.f32.xlu0 %v309
    %v311 = vpop.xlane.xlu0 %310
    %v312 = vmul.f32 %v247, %v247
    %v313 = vmul.f32 %v248, %v248
    %v314 = vmul.f32 %v249, %v249
    %v315 = vmul.f32 %v250, %v250
    %v316 = vmul.f32 %v251, %v251
    %v317 = vmul.f32 %v252, %v252
    %v318 = vmul.f32 %v253, %v253
    %v319 = vmul.f32 %v254, %v254
    %v320 = vmul.f32 %v255, %v255
    %v321 = vmul.f32 %v256, %v256
    %v322 = vmul.f32 %v257, %v257
    %v323 = vmul.f32 %v258, %v258
    %v324 = vmul.f32 %v259, %v259
    %v325 = vmul.f32 %v260, %v260
    %v326 = vmul.f32 %v261, %v261
    %v327 = vmul.f32 %v262, %v262
    %v328 = vsel %vm263, %v312, 0.0
    %329 = vadd.xlane.f32.xlu0 %v328
    %v330 = vpop.xlane.xlu0 %329
    %v331 = vsel %vm263, %v313, 0.0
    %332 = vadd.xlane.f32.xlu0 %v331
    %v333 = vpop.xlane.xlu0 %332
    %v334 = vsel %vm263, %v314, 0.0
    %335 = vadd.xlane.f32.xlu0 %v334
    %v336 = vpop.xlane.xlu0 %335
    %v337 = vsel %vm263, %v315, 0.0
    %338 = vadd.xlane.f32.xlu0 %v337
    %v339 = vpop.xlane.xlu0 %338
    %v340 = vsel %vm263, %v316, 0.0
    %341 = vadd.xlane.f32.xlu0 %v340
    %v342 = vpop.xlane.xlu0 %341
    %v343 = vsel %vm263, %v317, 0.0
    %344 = vadd.xlane.f32.xlu0 %v343
    %v345 = vpop.xlane.xlu0 %344
    %v346 = vsel %vm263, %v318, 0.0
    %347 = vadd.xlane.f32.xlu0 %v346
    %v348 = vpop.xlane.xlu0 %347
    %v349 = vsel %vm263, %v319, 0.0
    %350 = vadd.xlane.f32.xlu0 %v349
    %v351 = vpop.xlane.xlu0 %350
    %v352 = vsel %vm263, %v320, 0.0
    %353 = vadd.xlane.f32.xlu0 %v352
    %v354 = vpop.xlane.xlu0 %353
    %v355 = vsel %vm263, %v321, 0.0
    %356 = vadd.xlane.f32.xlu0 %v355
    %v357 = vpop.xlane.xlu0 %356
    %v358 = vsel %vm263, %v322, 0.0
    %359 = vadd.xlane.f32.xlu0 %v358
    %v360 = vpop.xlane.xlu0 %359
    %v361 = vsel %vm263, %v323, 0.0
    %362 = vadd.xlane.f32.xlu0 %v361
    %v363 = vpop.xlane.xlu0 %362
    %v364 = vsel %vm263, %v324, 0.0
    %365 = vadd.xlane.f32.xlu0 %v364
    %v366 = vpop.xlane.xlu0 %365
    %v367 = vsel %vm263, %v325, 0.0
    %368 = vadd.xlane.f32.xlu0 %v367
    %v369 = vpop.xlane.xlu0 %368
    %v370 = vsel %vm263, %v326, 0.0
    %371 = vadd.xlane.f32.xlu0 %v370
    %v372 = vpop.xlane.xlu0 %371
    %v373 = vsel %vm263, %v327, 0.0
    %374 = vadd.xlane.f32.xlu0 %v373
    %v375 = vpop.xlane.xlu0 %374
    %v376 = vmul.f32 %v266, 0.015625
    %v377 = vmul.f32 %v269, 0.015625
    %v378 = vmul.f32 %v272, 0.015625
    %v379 = vmul.f32 %v275, 0.015625
    %v380 = vmul.f32 %v278, 0.015625
    %v381 = vmul.f32 %v281, 0.015625
    %v382 = vmul.f32 %v284, 0.015625
    %v383 = vmul.f32 %v287, 0.015625
    %v384 = vmul.f32 %v290, 0.015625
    %v385 = vmul.f32 %v293, 0.015625
    %v386 = vmul.f32 %v296, 0.015625
    %v387 = vmul.f32 %v299, 0.015625
    %v388 = vmul.f32 %v302, 0.015625
    %v389 = vmul.f32 %v305, 0.015625
    %v390 = vmul.f32 %v308, 0.015625
    %v391 = vmul.f32 %v311, 0.015625
    %v392 = vmul.f32 %v330, 0.015625
    %v393 = vmul.f32 %v333, 0.015625
    %v394 = vmul.f32 %v336, 0.015625
    %v395 = vmul.f32 %v339, 0.015625
    %v396 = vmul.f32 %v342, 0.015625
    %v397 = vmul.f32 %v345, 0.015625
    %v398 = vmul.f32 %v348, 0.015625
    %v399 = vmul.f32 %v351, 0.015625
    %v400 = vmul.f32 %v354, 0.015625
    %v401 = vmul.f32 %v357, 0.015625
    %v402 = vmul.f32 %v360, 0.015625
    %v403 = vmul.f32 %v363, 0.015625
    %v404 = vmul.f32 %v366, 0.015625
    %v405 = vmul.f32 %v369, 0.015625
    %v406 = vmul.f32 %v372, 0.015625
    %v407 = vmul.f32 %v375, 0.015625
    %v408 = vmul.f32 %v376, %v376
    %v409 = vmul.f32 %v377, %v377
    %v410 = vmul.f32 %v378, %v378
    %v411 = vmul.f32 %v379, %v379
    %v412 = vmul.f32 %v380, %v380
    %v413 = vmul.f32 %v381, %v381
    %v414 = vmul.f32 %v382, %v382
    %v415 = vmul.f32 %v383, %v383
    %v416 = vmul.f32 %v384, %v384
    %v417 = vmul.f32 %v385, %v385
    %v418 = vmul.f32 %v386, %v386
    %v419 = vmul.f32 %v387, %v387
    %v420 = vmul.f32 %v388, %v388
    %v421 = vmul.f32 %v389, %v389
    %v422 = vmul.f32 %v390, %v390
    %v423 = vmul.f32 %v391, %v391
    %v424 = vsub.f32 %v392, %v408
    %v425 = vsub.f32 %v393, %v409
    %v426 = vsub.f32 %v394, %v410
    %v427 = vsub.f32 %v395, %v411
    %v428 = vsub.f32 %v396, %v412
    %v429 = vsub.f32 %v397, %v413
    %v430 = vsub.f32 %v398, %v414
    %v431 = vsub.f32 %v399, %v415
    %v432 = vsub.f32 %v400, %v416
    %v433 = vsub.f32 %v401, %v417
    %v434 = vsub.f32 %v402, %v418
    %v435 = vsub.f32 %v403, %v419
    %v436 = vsub.f32 %v404, %v420
    %v437 = vsub.f32 %v405, %v421
    %v438 = vsub.f32 %v406, %v422
    %v439 = vsub.f32 %v407, %v423
    %v440 = vsub.f32 %v247, %v376
    %v441 = vsub.f32 %v248, %v377
    %v442 = vsub.f32 %v249, %v378
    %v443 = vsub.f32 %v250, %v379
    %v444 = vsub.f32 %v251, %v380
    %v445 = vsub.f32 %v252, %v381
    %v446 = vsub.f32 %v253, %v382
    %v447 = vsub.f32 %v254, %v383
    %v448 = vsub.f32 %v255, %v384
    %v449 = vsub.f32 %v256, %v385
    %v450 = vsub.f32 %v257, %v386
    %v451 = vsub.f32 %v258, %v387
    %v452 = vsub.f32 %v259, %v388
    %v453 = vsub.f32 %v260, %v389
    %v454 = vsub.f32 %v261, %v390
    %v455 = vsub.f32 %v262, %v391
    %v456 = vadd.f32 %v424, 1e-05
    %v457 = vadd.f32 %v425, 1e-05
    %v458 = vadd.f32 %v426, 1e-05
    %v459 = vadd.f32 %v427, 1e-05
    %v460 = vadd.f32 %v428, 1e-05
    %v461 = vadd.f32 %v429, 1e-05
    %v462 = vadd.f32 %v430, 1e-05
    %v463 = vadd.f32 %v431, 1e-05
    %v464 = vadd.f32 %v432, 1e-05
    %v465 = vadd.f32 %v433, 1e-05
    %v466 = vadd.f32 %v434, 1e-05
    %v467 = vadd.f32 %v435, 1e-05
    %v468 = vadd.f32 %v436, 1e-05
    %v469 = vadd.f32 %v437, 1e-05
    %v470 = vadd.f32 %v438, 1e-05
    %v471 = vadd.f32 %v439, 1e-05
    %v472 = vrsqrt.pop %v456
    %v473 = vrsqrt.pop %v457
    %v474 = vrsqrt.pop %v458
    %v475 = vrsqrt.pop %v459
    %v476 = vrsqrt.pop %v460
    %v477 = vrsqrt.pop %v461
    %v478 = vrsqrt.pop %v462
    %v479 = vrsqrt.pop %v463
    %v480 = vrsqrt.pop %v464
    %v481 = vrsqrt.pop %v465
    %v482 = vrsqrt.pop %v466
    %v483 = vrsqrt.pop %v467
    %v484 = vrsqrt.pop %v468
    %v485 = vrsqrt.pop %v469
    %v486 = vrsqrt.pop %v470
    %v487 = vrsqrt.pop %v471
    %v488 = vmul.f32 %v440, %v472
    %v489 = vmul.f32 %v441, %v473
    %v490 = vmul.f32 %v442, %v474
    %v491 = vmul.f32 %v443, %v475
    %v492 = vmul.f32 %v444, %v476
    %v493 = vmul.f32 %v445, %v477
    %v494 = vmul.f32 %v446, %v478
    %v495 = vmul.f32 %v447, %v479
    %v496 = vmul.f32 %v448, %v480
    %v497 = vmul.f32 %v449, %v481
    %v498 = vmul.f32 %v450, %v482
    %v499 = vmul.f32 %v451, %v483
    %v500 = vmul.f32 %v452, %v484
    %v501 = vmul.f32 %v453, %v485
    %v502 = vmul.f32 %v454, %v486
    %v503 = vmul.f32 %v455, %v487
    %v504 = vlaneseq
    %v505 = vshrl.u32 %v504, 7
    %v506 = vsub.s32 0, %v505
    %v507 = vrot.slane %v42, %v506
    %v508 = vmul.f32 %v488, %v507
    %v509 = vmul.f32 %v489, %v507
    %v510 = vmul.f32 %v490, %v507
    %v511 = vmul.f32 %v491, %v507
    %v512 = vmul.f32 %v492, %v507
    %v513 = vmul.f32 %v493, %v507
    %v514 = vmul.f32 %v494, %v507
    %v515 = vmul.f32 %v495, %v507
    %v516 = vmul.f32 %v496, %v507
    %v517 = vmul.f32 %v497, %v507
    %v518 = vmul.f32 %v498, %v507
    %v519 = vmul.f32 %v499, %v507
    %v520 = vmul.f32 %v500, %v507
    %v521 = vmul.f32 %v501, %v507
    %v522 = vmul.f32 %v502, %v507
    %v523 = vmul.f32 %v503, %v507
    %v524 = vlaneseq
    %v525 = vshrl.u32 %v524, 7
    %v526 = vsub.s32 0, %v525
    %v527 = vrot.slane %v43, %v526
    %v528 = vadd.f32 %v508, %v527
    %v529 = vadd.f32 %v509, %v527
    %v530 = vadd.f32 %v510, %v527
    %v531 = vadd.f32 %v511, %v527
    %v532 = vadd.f32 %v512, %v527
    %v533 = vadd.f32 %v513, %v527
    %v534 = vadd.f32 %v514, %v527
    %v535 = vadd.f32 %v515, %v527
    %v536 = vadd.f32 %v516, %v527
    %v537 = vadd.f32 %v517, %v527
    %v538 = vadd.f32 %v518, %v527
    %v539 = vadd.f32 %v519, %v527
    %v540 = vadd.f32 %v520, %v527
    %v541 = vadd.f32 %v521, %v527
    %v542 = vadd.f32 %v522, %v527
    %v543 = vadd.f32 %v523, %v527
    %v544 = vld [vmem:[%s2] sm:$0xff]
    %v545 = vld [vmem:[%s2 + $0x8] sm:$0xff]
    %v546 = vld [vmem:[%s2 + $0x10] sm:$0xff]
    %v547 = vld [vmem:[%s2 + $0x18] sm:$0xff]
    %v548 = vld [vmem:[%s2 + $0x20] sm:$0xff]
    %v549 = vld [vmem:[%s2 + $0x28] sm:$0xff]
    %v550 = vld [vmem:[%s2 + $0x30] sm:$0xff]
    %v551 = vld [vmem:[%s2 + $0x38] sm:$0xff]
    %v552 = vlaneseq
    %v553 = vshrl.u32 %v552, 7
    %v554 = vsub.s32 0, %v553
    %v555 = vrot.slane %v44, %v554
    %v557 = vsel %vm263, %v528, 0
    %v560 = vsel %vm263, %v529, 0
    %v563 = vsel %vm263, %v530, 0
    %v566 = vsel %vm263, %v531, 0
    %v569 = vsel %vm263, %v532, 0
    %v572 = vsel %vm263, %v533, 0
    %v575 = vsel %vm263, %v534, 0
    %v578 = vsel %vm263, %v535, 0
    %v581 = vsel %vm263, %v536, 0
    %v584 = vsel %vm263, %v537, 0
    %v587 = vsel %vm263, %v538, 0
    %v590 = vsel %vm263, %v539, 0
    %v593 = vsel %vm263, %v540, 0
    %v596 = vsel %vm263, %v541, 0
    %v599 = vsel %vm263, %v542, 0
    %v602 = vsel %vm263, %v543, 0
    %604 = vmatprep.subr.mxu0 0.0
    %605 = vmatpush1.msra.mxu0 %v544
    %606 = vmatprep.subr.mxu0 0.0
    %607 = vmatpush1.msra.mxu0 %v545
    %608 = vmatprep.subr.mxu0 0.0
    %609 = vmatpush1.msra.mxu0 %v546
    %610 = vmatprep.subr.mxu0 0.0
    %611 = vmatpush1.msra.mxu0 %v547
    %612 = vmatprep.subr.mxu0 0.0
    %613 = vmatpush1.msra.mxu0 %v548
    %614 = vmatprep.subr.mxu0 0.0
    %615 = vmatpush1.msra.mxu0 %v549
    %616 = vmatprep.subr.mxu0 0.0
    %617 = vmatpush1.msra.mxu0 %v550
    %618 = vmatprep.subr.mxu0 0.0
    %619 = vmatpush1.msra.mxu0 %v551
    %620 = vmatprep.subr.mxu0 0.0
    %621 = vmatpush1.msra.mxu0 0.0
    %622 = vmatprep.subr.mxu0 0.0
    %623 = vmatpush1.msra.mxu0 0.0
    %624 = vmatprep.subr.mxu0 0.0
    %625 = vmatpush1.msra.mxu0 0.0
    %626 = vmatprep.subr.mxu0 0.0
    %627 = vmatpush1.msra.mxu0 0.0
    %628 = vmatprep.subr.mxu0 0.0
    %629 = vmatpush1.msra.mxu0 0.0
    %630 = vmatprep.subr.mxu0 0.0
    %631 = vmatpush1.msra.mxu0 0.0
    %632 = vmatprep.subr.mxu0 0.0
    %633 = vmatpush1.msra.mxu0 0.0
    %634 = vmatprep.subr.mxu0 0.0
    %635 = vmatpush1.msra.mxu0 0.0
    %636 = vmatprep.subr.mxu0 0.0
    %637 = vmatpush1.msra.mxu0 0.0
    %638 = vmatprep.subr.mxu0 0.0
    %639 = vmatpush1.msra.mxu0 0.0
    %640 = vmatprep.subr.mxu0 0.0
    %641 = vmatpush1.msra.mxu0 0.0
    %642 = vmatprep.subr.mxu0 0.0
    %643 = vmatpush1.msra.mxu0 0.0
    %644 = vmatprep.subr.mxu0 0.0
    %645 = vmatpush1.msra.mxu0 0.0
    %646 = vmatprep.subr.mxu0 0.0
    %647 = vmatpush1.msra.mxu0 0.0
    %648 = vmatprep.subr.mxu0 0.0
    %649 = vmatpush1.msra.mxu0 0.0
    %650 = vmatprep.subr.mxu0 0.0
    %651 = vmatpush1.msra.mxu0 0.0
    %652 = vmatprep.subr.mxu0 0.0
    %653 = vmatpush1.msra.mxu0 0.0
    %654 = vmatprep.subr.mxu0 0.0
    %655 = vmatpush1.msra.mxu0 0.0
    %656 = vmatprep.subr.mxu0 0.0
    %657 = vmatpush1.msra.mxu0 0.0
    %658 = vmatprep.subr.mxu0 0.0
    %659 = vmatpush1.msra.mxu0 0.0
    %660 = vmatprep.subr.mxu0 0.0
    %661 = vmatpush1.msra.mxu0 0.0
    %662 = vmatprep.subr.mxu0 0.0
    %663 = vmatpush1.msra.mxu0 0.0
    %664 = vmatprep.subr.mxu0 0.0
    %665 = vmatpush1.msra.mxu0 0.0
    %666 = vmatprep.subr.mxu0 0.0
    %667 = vmatpush1.msra.mxu0 0.0
    %668 = vmatprep.mubr.f32.mxu0 0.0
    %669 = vmatmul.mubr.f32.gmra.mrb[0].mxu0 %v557
    %v670 = vpop.f32.mrb[0].mxu0
    %v671 = vadd.f32 %v555, %v670
    %v672 = vpop.f32.mrb[0].mxu0
    %673 = vmatprep.mubr.f32.mxu0 0.0
    %674 = vmatmul.mubr.f32.gmra.mrb[0].mxu0 %v560
    %v675 = vpop.f32.mrb[0].mxu0
    %v676 = vadd.f32 %v555, %v675
    %v677 = vpop.f32.mrb[0].mxu0
    %678 = vmatprep.mubr.f32.mxu0 0.0
    %679 = vmatmul.mubr.f32.gmra.mrb[0].mxu0 %v563
    %v680 = vpop.f32.mrb[0].mxu0
    %v681 = vadd.f32 %v555, %v680
    %v682 = vpop.f32.mrb[0].mxu0
    %683 = vmatprep.mubr.f32.mxu0 0.0
    %684 = vmatmul.mubr.f32.gmra.mrb[0].mxu0 %v566
    %v685 = vpop.f32.mrb[0].mxu0
    %v686 = vadd.f32 %v555, %v685
    %v687 = vpop.f32.mrb[0].mxu0
    %688 = vmatprep.mubr.f32.mxu0 0.0
    %689 = vmatmul.mubr.f32.gmra.mrb[0].mxu0 %v569
    %v690 = vpop.f32.mrb[0].mxu0
    %v691 = vadd.f32 %v555, %v690
    %v692 = vpop.f32.mrb[0].mxu0
    %693 = vmatprep.mubr.f32.mxu0 0.0
    %694 = vmatmul.mubr.f32.gmra.mrb[0].mxu0 %v572
    %v695 = vpop.f32.mrb[0].mxu0
    %v696 = vadd.f32 %v555, %v695
    %v697 = vpop.f32.mrb[0].mxu0
    %698 = vmatprep.mubr.f32.mxu0 0.0
    %699 = vmatmul.mubr.f32.gmra.mrb[0].mxu0 %v575
    %v700 = vpop.f32.mrb[0].mxu0
    %v701 = vadd.f32 %v555, %v700
    %v702 = vpop.f32.mrb[0].mxu0
    %703 = vmatprep.mubr.f32.mxu0 0.0
    %704 = vmatmul.mubr.f32.gmra.mrb[0].mxu0 %v578
    %v705 = vpop.f32.mrb[0].mxu0
    %v706 = vadd.f32 %v555, %v705
    %v707 = vpop.f32.mrb[0].mxu0
    %708 = vmatprep.mubr.f32.mxu0 0.0
    %709 = vmatmul.mubr.f32.gmra.mrb[0].mxu0 %v581
    %v710 = vpop.f32.mrb[0].mxu0
    %v711 = vadd.f32 %v555, %v710
    %v712 = vpop.f32.mrb[0].mxu0
    %713 = vmatprep.mubr.f32.mxu0 0.0
    %714 = vmatmul.mubr.f32.gmra.mrb[0].mxu0 %v584
    %v715 = vpop.f32.mrb[0].mxu0
    %v716 = vadd.f32 %v555, %v715
    %v717 = vpop.f32.mrb[0].mxu0
    %718 = vmatprep.mubr.f32.mxu0 0.0
    %719 = vmatmul.mubr.f32.gmra.mrb[0].mxu0 %v587
    %v720 = vpop.f32.mrb[0].mxu0
    %v721 = vadd.f32 %v555, %v720
    %v722 = vpop.f32.mrb[0].mxu0
    %723 = vmatprep.mubr.f32.mxu0 0.0
    %724 = vmatmul.mubr.f32.gmra.mrb[0].mxu0 %v590
    %v725 = vpop.f32.mrb[0].mxu0
    %v726 = vadd.f32 %v555, %v725
    %v727 = vpop.f32.mrb[0].mxu0
    %728 = vmatprep.mubr.f32.mxu0 0.0
    %729 = vmatmul.mubr.f32.gmra.mrb[0].mxu0 %v593
    %v730 = vpop.f32.mrb[0].mxu0
    %v731 = vadd.f32 %v555, %v730
    %v732 = vpop.f32.mrb[0].mxu0
    %733 = vmatprep.mubr.f32.mxu0 0.0
    %734 = vmatmul.mubr.f32.gmra.mrb[0].mxu0 %v596
    %v735 = vpop.f32.mrb[0].mxu0
    %v736 = vadd.f32 %v555, %v735
    %v737 = vpop.f32.mrb[0].mxu0
    %738 = vmatprep.mubr.f32.mxu0 0.0
    %739 = vmatmul.mubr.f32.gmra.mrb[0].mxu0 %v599
    %v740 = vpop.f32.mrb[0].mxu0
    %v741 = vadd.f32 %v555, %v740
    %v742 = vpop.f32.mrb[0].mxu0
    %743 = vmatprep.mubr.f32.mxu0 0.0
    %744 = vmatmul.mubr.f32.gmra.mrb[0].mxu0 %v602
    %v745 = vpop.f32.mrb[0].mxu0
    %v746 = vadd.f32 %v555, %v745
    %v747 = vpop.f32.mrb[0].mxu0
    %748 = vdwg.mxu0
    %v749 = vtanh.pop %v671
    %v750 = vtanh.pop %v676
    %v751 = vtanh.pop %v681
    %v752 = vtanh.pop %v686
    %v753 = vtanh.pop %v691
    %v754 = vtanh.pop %v696
    %v755 = vtanh.pop %v701
    %v756 = vtanh.pop %v706
    %v757 = vtanh.pop %v711
    %v758 = vtanh.pop %v716
    %v759 = vtanh.pop %v721
    %v760 = vtanh.pop %v726
    %v761 = vtanh.pop %v731
    %v762 = vtanh.pop %v736
    %v763 = vtanh.pop %v741
    %v764 = vtanh.pop %v746
    %v765 = vsel %vm263, %v749, 0.0
    %766 = vadd.xlane.f32.xlu0 %v765
    %v767 = vpop.xlane.xlu0 %766
    %v768 = vsel %vm263, %v750, 0.0
    %769 = vadd.xlane.f32.xlu0 %v768
    %v770 = vpop.xlane.xlu0 %769
    %v771 = vsel %vm263, %v751, 0.0
    %772 = vadd.xlane.f32.xlu0 %v771
    %v773 = vpop.xlane.xlu0 %772
    %v774 = vsel %vm263, %v752, 0.0
    %775 = vadd.xlane.f32.xlu0 %v774
    %v776 = vpop.xlane.xlu0 %775
    %v777 = vsel %vm263, %v753, 0.0
    %778 = vadd.xlane.f32.xlu0 %v777
    %v779 = vpop.xlane.xlu0 %778
    %v780 = vsel %vm263, %v754, 0.0
    %781 = vadd.xlane.f32.xlu0 %v780
    %v782 = vpop.xlane.xlu0 %781
    %v783 = vsel %vm263, %v755, 0.0
    %784 = vadd.xlane.f32.xlu0 %v783
    %v785 = vpop.xlane.xlu0 %784
    %v786 = vsel %vm263, %v756, 0.0
    %787 = vadd.xlane.f32.xlu0 %v786
    %v788 = vpop.xlane.xlu0 %787
    %v789 = vsel %vm263, %v757, 0.0
    %790 = vadd.xlane.f32.xlu0 %v789
    %v791 = vpop.xlane.xlu0 %790
    %v792 = vsel %vm263, %v758, 0.0
    %793 = vadd.xlane.f32.xlu0 %v792
    %v794 = vpop.xlane.xlu0 %793
    %v795 = vsel %vm263, %v759, 0.0
    %796 = vadd.xlane.f32.xlu0 %v795
    %v797 = vpop.xlane.xlu0 %796
    %v798 = vsel %vm263, %v760, 0.0
    %799 = vadd.xlane.f32.xlu0 %v798
    %v800 = vpop.xlane.xlu0 %799
    %v801 = vsel %vm263, %v761, 0.0
    %802 = vadd.xlane.f32.xlu0 %v801
    %v803 = vpop.xlane.xlu0 %802
    %v804 = vsel %vm263, %v762, 0.0
    %805 = vadd.xlane.f32.xlu0 %v804
    %v806 = vpop.xlane.xlu0 %805
    %v807 = vsel %vm263, %v763, 0.0
    %808 = vadd.xlane.f32.xlu0 %v807
    %v809 = vpop.xlane.xlu0 %808
    %v810 = vsel %vm263, %v764, 0.0
    %811 = vadd.xlane.f32.xlu0 %v810
    %v812 = vpop.xlane.xlu0 %811
    %v813 = vmul.f32 %v749, %v749
    %v814 = vmul.f32 %v750, %v750
    %v815 = vmul.f32 %v751, %v751
    %v816 = vmul.f32 %v752, %v752
    %v817 = vmul.f32 %v753, %v753
    %v818 = vmul.f32 %v754, %v754
    %v819 = vmul.f32 %v755, %v755
    %v820 = vmul.f32 %v756, %v756
    %v821 = vmul.f32 %v757, %v757
    %v822 = vmul.f32 %v758, %v758
    %v823 = vmul.f32 %v759, %v759
    %v824 = vmul.f32 %v760, %v760
    %v825 = vmul.f32 %v761, %v761
    %v826 = vmul.f32 %v762, %v762
    %v827 = vmul.f32 %v763, %v763
    %v828 = vmul.f32 %v764, %v764
    %v829 = vsel %vm263, %v813, 0.0
    %830 = vadd.xlane.f32.xlu0 %v829
    %v831 = vpop.xlane.xlu0 %830
    %v832 = vsel %vm263, %v814, 0.0
    %833 = vadd.xlane.f32.xlu0 %v832
    %v834 = vpop.xlane.xlu0 %833
    %v835 = vsel %vm263, %v815, 0.0
    %836 = vadd.xlane.f32.xlu0 %v835
    %v837 = vpop.xlane.xlu0 %836
    %v838 = vsel %vm263, %v816, 0.0
    %839 = vadd.xlane.f32.xlu0 %v838
    %v840 = vpop.xlane.xlu0 %839
    %v841 = vsel %vm263, %v817, 0.0
    %842 = vadd.xlane.f32.xlu0 %v841
    %v843 = vpop.xlane.xlu0 %842
    %v844 = vsel %vm263, %v818, 0.0
    %845 = vadd.xlane.f32.xlu0 %v844
    %v846 = vpop.xlane.xlu0 %845
    %v847 = vsel %vm263, %v819, 0.0
    %848 = vadd.xlane.f32.xlu0 %v847
    %v849 = vpop.xlane.xlu0 %848
    %v850 = vsel %vm263, %v820, 0.0
    %851 = vadd.xlane.f32.xlu0 %v850
    %v852 = vpop.xlane.xlu0 %851
    %v853 = vsel %vm263, %v821, 0.0
    %854 = vadd.xlane.f32.xlu0 %v853
    %v855 = vpop.xlane.xlu0 %854
    %v856 = vsel %vm263, %v822, 0.0
    %857 = vadd.xlane.f32.xlu0 %v856
    %v858 = vpop.xlane.xlu0 %857
    %v859 = vsel %vm263, %v823, 0.0
    %860 = vadd.xlane.f32.xlu0 %v859
    %v861 = vpop.xlane.xlu0 %860
    %v862 = vsel %vm263, %v824, 0.0
    %863 = vadd.xlane.f32.xlu0 %v862
    %v864 = vpop.xlane.xlu0 %863
    %v865 = vsel %vm263, %v825, 0.0
    %866 = vadd.xlane.f32.xlu0 %v865
    %v867 = vpop.xlane.xlu0 %866
    %v868 = vsel %vm263, %v826, 0.0
    %869 = vadd.xlane.f32.xlu0 %v868
    %v870 = vpop.xlane.xlu0 %869
    %v871 = vsel %vm263, %v827, 0.0
    %872 = vadd.xlane.f32.xlu0 %v871
    %v873 = vpop.xlane.xlu0 %872
    %v874 = vsel %vm263, %v828, 0.0
    %875 = vadd.xlane.f32.xlu0 %v874
    %v876 = vpop.xlane.xlu0 %875
    %v877 = vmul.f32 %v767, 0.015625
    %v878 = vmul.f32 %v770, 0.015625
    %v879 = vmul.f32 %v773, 0.015625
    %v880 = vmul.f32 %v776, 0.015625
    %v881 = vmul.f32 %v779, 0.015625
    %v882 = vmul.f32 %v782, 0.015625
    %v883 = vmul.f32 %v785, 0.015625
    %v884 = vmul.f32 %v788, 0.015625
    %v885 = vmul.f32 %v791, 0.015625
    %v886 = vmul.f32 %v794, 0.015625
    %v887 = vmul.f32 %v797, 0.015625
    %v888 = vmul.f32 %v800, 0.015625
    %v889 = vmul.f32 %v803, 0.015625
    %v890 = vmul.f32 %v806, 0.015625
    %v891 = vmul.f32 %v809, 0.015625
    %v892 = vmul.f32 %v812, 0.015625
    %v893 = vmul.f32 %v831, 0.015625
    %v894 = vmul.f32 %v834, 0.015625
    %v895 = vmul.f32 %v837, 0.015625
    %v896 = vmul.f32 %v840, 0.015625
    %v897 = vmul.f32 %v843, 0.015625
    %v898 = vmul.f32 %v846, 0.015625
    %v899 = vmul.f32 %v849, 0.015625
    %v900 = vmul.f32 %v852, 0.015625
    %v901 = vmul.f32 %v855, 0.015625
    %v902 = vmul.f32 %v858, 0.015625
    %v903 = vmul.f32 %v861, 0.015625
    %v904 = vmul.f32 %v864, 0.015625
    %v905 = vmul.f32 %v867, 0.015625
    %v906 = vmul.f32 %v870, 0.015625
    %v907 = vmul.f32 %v873, 0.015625
    %v908 = vmul.f32 %v876, 0.015625
    %v909 = vmul.f32 %v877, %v877
    %v910 = vmul.f32 %v878, %v878
    %v911 = vmul.f32 %v879, %v879
    %v912 = vmul.f32 %v880, %v880
    %v913 = vmul.f32 %v881, %v881
    %v914 = vmul.f32 %v882, %v882
    %v915 = vmul.f32 %v883, %v883
    %v916 = vmul.f32 %v884, %v884
    %v917 = vmul.f32 %v885, %v885
    %v918 = vmul.f32 %v886, %v886
    %v919 = vmul.f32 %v887, %v887
    %v920 = vmul.f32 %v888, %v888
    %v921 = vmul.f32 %v889, %v889
    %v922 = vmul.f32 %v890, %v890
    %v923 = vmul.f32 %v891, %v891
    %v924 = vmul.f32 %v892, %v892
    %v925 = vsub.f32 %v893, %v909
    %v926 = vsub.f32 %v894, %v910
    %v927 = vsub.f32 %v895, %v911
    %v928 = vsub.f32 %v896, %v912
    %v929 = vsub.f32 %v897, %v913
    %v930 = vsub.f32 %v898, %v914
    %v931 = vsub.f32 %v899, %v915
    %v932 = vsub.f32 %v900, %v916
    %v933 = vsub.f32 %v901, %v917
    %v934 = vsub.f32 %v902, %v918
    %v935 = vsub.f32 %v903, %v919
    %v936 = vsub.f32 %v904, %v920
    %v937 = vsub.f32 %v905, %v921
    %v938 = vsub.f32 %v906, %v922
    %v939 = vsub.f32 %v907, %v923
    %v940 = vsub.f32 %v908, %v924
    %v941 = vsub.f32 %v749, %v877
    %v942 = vsub.f32 %v750, %v878
    %v943 = vsub.f32 %v751, %v879
    %v944 = vsub.f32 %v752, %v880
    %v945 = vsub.f32 %v753, %v881
    %v946 = vsub.f32 %v754, %v882
    %v947 = vsub.f32 %v755, %v883
    %v948 = vsub.f32 %v756, %v884
    %v949 = vsub.f32 %v757, %v885
    %v950 = vsub.f32 %v758, %v886
    %v951 = vsub.f32 %v759, %v887
    %v952 = vsub.f32 %v760, %v888
    %v953 = vsub.f32 %v761, %v889
    %v954 = vsub.f32 %v762, %v890
    %v955 = vsub.f32 %v763, %v891
    %v956 = vsub.f32 %v764, %v892
    %v957 = vadd.f32 %v925, 1e-05
    %v958 = vadd.f32 %v926, 1e-05
    %v959 = vadd.f32 %v927, 1e-05
    %v960 = vadd.f32 %v928, 1e-05
    %v961 = vadd.f32 %v929, 1e-05
    %v962 = vadd.f32 %v930, 1e-05
    %v963 = vadd.f32 %v931, 1e-05
    %v964 = vadd.f32 %v932, 1e-05
    %v965 = vadd.f32 %v933, 1e-05
    %v966 = vadd.f32 %v934, 1e-05
    %v967 = vadd.f32 %v935, 1e-05
    %v968 = vadd.f32 %v936, 1e-05
    %v969 = vadd.f32 %v937, 1e-05
    %v970 = vadd.f32 %v938, 1e-05
    %v971 = vadd.f32 %v939, 1e-05
    %v972 = vadd.f32 %v940, 1e-05
    %v973 = vrsqrt.pop %v957
    %v974 = vrsqrt.pop %v958
    %v975 = vrsqrt.pop %v959
    %v976 = vrsqrt.pop %v960
    %v977 = vrsqrt.pop %v961
    %v978 = vrsqrt.pop %v962
    %v979 = vrsqrt.pop %v963
    %v980 = vrsqrt.pop %v964
    %v981 = vrsqrt.pop %v965
    %v982 = vrsqrt.pop %v966
    %v983 = vrsqrt.pop %v967
    %v984 = vrsqrt.pop %v968
    %v985 = vrsqrt.pop %v969
    %v986 = vrsqrt.pop %v970
    %v987 = vrsqrt.pop %v971
    %v988 = vrsqrt.pop %v972
    %v989 = vmul.f32 %v941, %v973
    %v990 = vmul.f32 %v942, %v974
    %v991 = vmul.f32 %v943, %v975
    %v992 = vmul.f32 %v944, %v976
    %v993 = vmul.f32 %v945, %v977
    %v994 = vmul.f32 %v946, %v978
    %v995 = vmul.f32 %v947, %v979
    %v996 = vmul.f32 %v948, %v980
    %v997 = vmul.f32 %v949, %v981
    %v998 = vmul.f32 %v950, %v982
    %v999 = vmul.f32 %v951, %v983
    %v1000 = vmul.f32 %v952, %v984
    %v1001 = vmul.f32 %v953, %v985
    %v1002 = vmul.f32 %v954, %v986
    %v1003 = vmul.f32 %v955, %v987
    %v1004 = vmul.f32 %v956, %v988
    %v1005 = vlaneseq
    %v1006 = vshrl.u32 %v1005, 7
    %v1007 = vsub.s32 0, %v1006
    %v1008 = vrot.slane %v45, %v1007
    %v1009 = vmul.f32 %v989, %v1008
    %v1010 = vmul.f32 %v990, %v1008
    %v1011 = vmul.f32 %v991, %v1008
    %v1012 = vmul.f32 %v992, %v1008
    %v1013 = vmul.f32 %v993, %v1008
    %v1014 = vmul.f32 %v994, %v1008
    %v1015 = vmul.f32 %v995, %v1008
    %v1016 = vmul.f32 %v996, %v1008
    %v1017 = vmul.f32 %v997, %v1008
    %v1018 = vmul.f32 %v998, %v1008
    %v1019 = vmul.f32 %v999, %v1008
    %v1020 = vmul.f32 %v1000, %v1008
    %v1021 = vmul.f32 %v1001, %v1008
    %v1022 = vmul.f32 %v1002, %v1008
    %v1023 = vmul.f32 %v1003, %v1008
    %v1024 = vmul.f32 %v1004, %v1008
    %v1025 = vlaneseq
    %v1026 = vshrl.u32 %v1025, 7
    %v1027 = vsub.s32 0, %v1026
    %v1028 = vrot.slane %v46, %v1027
    %v1029 = vadd.f32 %v1009, %v1028
    %v1030 = vadd.f32 %v1010, %v1028
    %v1031 = vadd.f32 %v1011, %v1028
    %v1032 = vadd.f32 %v1012, %v1028
    %v1033 = vadd.f32 %v1013, %v1028
    %v1034 = vadd.f32 %v1014, %v1028
    %v1035 = vadd.f32 %v1015, %v1028
    %v1036 = vadd.f32 %v1016, %v1028
    %v1037 = vadd.f32 %v1017, %v1028
    %v1038 = vadd.f32 %v1018, %v1028
    %v1039 = vadd.f32 %v1019, %v1028
    %v1040 = vadd.f32 %v1020, %v1028
    %v1041 = vadd.f32 %v1021, %v1028
    %v1042 = vadd.f32 %v1022, %v1028
    %v1043 = vadd.f32 %v1023, %v1028
    %v1044 = vadd.f32 %v1024, %v1028
    %v1045 = vld [vmem:[%s3] sm:$0x1]
    %s1046 = sld [smem:[#allocation2]]
    %v1047 = vstv %s1046
    %v1049 = vsel %vm263, %v1045, 0
    %v1052 = vsel %vm263, %v1029, 0
    %v1055 = vsel %vm263, %v1030, 0
    %v1058 = vsel %vm263, %v1031, 0
    %v1061 = vsel %vm263, %v1032, 0
    %v1064 = vsel %vm263, %v1033, 0
    %v1067 = vsel %vm263, %v1034, 0
    %v1070 = vsel %vm263, %v1035, 0
    %v1073 = vsel %vm263, %v1036, 0
    %v1076 = vsel %vm263, %v1037, 0
    %v1079 = vsel %vm263, %v1038, 0
    %v1082 = vsel %vm263, %v1039, 0
    %v1085 = vsel %vm263, %v1040, 0
    %v1088 = vsel %vm263, %v1041, 0
    %v1091 = vsel %vm263, %v1042, 0
    %v1094 = vsel %vm263, %v1043, 0
    %v1097 = vsel %vm263, %v1044, 0
    %1099 = vmatprep.subr.mxu0 0.0
    %1100 = vmatpush1.xpose.msra.mxu0 %v1052
    %1101 = vmatprep.subr.mxu0 0.0
    %1102 = vmatpush1.xpose.msra.mxu0 %v1055
    %1103 = vmatprep.subr.mxu0 0.0
    %1104 = vmatpush1.xpose.msra.mxu0 %v1058
    %1105 = vmatprep.subr.mxu0 0.0
    %1106 = vmatpush1.xpose.msra.mxu0 %v1061
    %1107 = vmatprep.subr.mxu0 0.0
    %1108 = vmatpush1.xpose.msra.mxu0 %v1064
    %1109 = vmatprep.subr.mxu0 0.0
    %1110 = vmatpush1.xpose.msra.mxu0 %v1067
    %1111 = vmatprep.subr.mxu0 0.0
    %1112 = vmatpush1.xpose.msra.mxu0 %v1070
    %1113 = vmatprep.subr.mxu0 0.0
    %1114 = vmatpush1.xpose.msra.mxu0 %v1073
    %1115 = vmatprep.subr.mxu0 0.0
    %1116 = vmatpush1.xpose.msra.mxu0 %v1076
    %1117 = vmatprep.subr.mxu0 0.0
    %1118 = vmatpush1.xpose.msra.mxu0 %v1079
    %1119 = vmatprep.subr.mxu0 0.0
    %1120 = vmatpush1.xpose.msra.mxu0 %v1082
    %1121 = vmatprep.subr.mxu0 0.0
    %1122 = vmatpush1.xpose.msra.mxu0 %v1085
    %1123 = vmatprep.subr.mxu0 0.0
    %1124 = vmatpush1.xpose.msra.mxu0 %v1088
    %1125 = vmatprep.subr.mxu0 0.0
    %1126 = vmatpush1.xpose.msra.mxu0 %v1091
    %1127 = vmatprep.subr.mxu0 0.0
    %1128 = vmatpush1.xpose.msra.mxu0 %v1094
    %1129 = vmatprep.subr.mxu0 0.0
    %1130 = vmatpush1.xpose.msra.mxu0 %v1097
    %1131 = vmatprep.subr.mxu0 0.0
    %1132 = vmatpush1.xpose.msra.mxu0 0.0
    %1133 = vmatprep.subr.mxu0 0.0
    %1134 = vmatpush1.xpose.msra.mxu0 0.0
    %1135 = vmatprep.subr.mxu0 0.0
    %1136 = vmatpush1.xpose.msra.mxu0 0.0
    %1137 = vmatprep.subr.mxu0 0.0
    %1138 = vmatpush1.xpose.msra.mxu0 0.0
    %1139 = vmatprep.subr.mxu0 0.0
    %1140 = vmatpush1.xpose.msra.mxu0 0.0
    %1141 = vmatprep.subr.mxu0 0.0
    %1142 = vmatpush1.xpose.msra.mxu0 0.0
    %1143 = vmatprep.subr.mxu0 0.0
    %1144 = vmatpush1.xpose.msra.mxu0 0.0
    %1145 = vmatprep.subr.mxu0 0.0
    %1146 = vmatpush1.xpose.msra.mxu0 0.0
    %1147 = vmatprep.subr.mxu0 0.0
    %1148 = vmatpush1.xpose.msra.mxu0 0.0
    %1149 = vmatprep.subr.mxu0 0.0
    %1150 = vmatpush1.xpose.msra.mxu0 0.0
    %1151 = vmatprep.subr.mxu0 0.0
    %1152 = vmatpush1.xpose.msra.mxu0 0.0
    %1153 = vmatprep.subr.mxu0 0.0
    %1154 = vmatpush1.xpose.msra.mxu0 0.0
    %1155 = vmatprep.subr.mxu0 0.0
    %1156 = vmatpush1.xpose.msra.mxu0 0.0
    %1157 = vmatprep.subr.mxu0 0.0
    %1158 = vmatpush1.xpose.msra.mxu0 0.0
    %1159 = vmatprep.subr.mxu0 0.0
    %1160 = vmatpush1.xpose.msra.mxu0 0.0
    %1161 = vmatprep.subr.mxu0 0.0
    %1162 = vmatpush1.xpose.msra.mxu0 0.0
    %1163 = vmatprep.mubr.f32.mxu0 0.0
    %1164 = vmatmul.mubr.f32.gmra.mrb[0].mxu0 %v1049
    %v1165 = vpop.f32.mrb[0].mxu0
    %v1166 = vadd.f32 %v1047, %v1165
    %v1167 = vpop.f32.mrb[0].mxu0
    %1168 = vdwg.mxu0
    %1169 = vst [vmem:[#allocation3] sm:$0x1] %v1166
    // Predicated region
    $region26: #{tpu_custom_call.1} parent=1 // pred_check
      _
    $region27: #{tpu_custom_call.1} parent=1 // pred_check_branch
      %1171 = sbr.rel (0) target = $region29
    $region28: #{tpu_custom_call.1} parent=1 // pred_region
      %s1173 = ssub.s32 16, 16
      %1174 = vsyncadd [#allocation4], %s1173
      %s1176 = sshll.u32 [#allocation3], 4
      %s1177 = int_to_ptr.vmem [resolvable:$true] %s1176
      %1179 = dma.vmem_to_hbm [thread:$0]  %s1177, 16, %s6, [#allocation4]
    $region29: #{tpu_custom_call.1} parent=1 // pred_fallthru
      _
    // Predicated region
    $region30: #{tpu_custom_call.1} parent=1 // pred_check
      _
    $region31: #{tpu_custom_call.1} parent=1 // pred_check_branch
      %1181 = sbr.rel (0) target = $region33
    $region32: #{tpu_custom_call.1} parent=1 // pred_region
      %1182 = dma.done [#allocation4], 16
    $region33: #{tpu_custom_call.1} parent=1 // pred_fallthru
      _
    %1183 = vsyncpa [#allocation4], 1

</llo_original>
